<compile_context>
chip_gen: v7x
topology: tpu7x:2x2x1
jax: 0.10.0
libtpu: 0.0.40
codegen_flags: <defaults>
</compile_context>

<pallas_src>
import math
import functools

import jax
import jax.numpy as jnp
from jax.experimental import pallas as pl
from jax.experimental.pallas import tpu as pltpu


# ---------------------------------------------------------------------------
# Parameter / buffer construction (deterministic, mirrors torch __init__)
# ---------------------------------------------------------------------------
def sinusoidal_table(num_rows, d_model):
    """Same construction as PositionalEmbedding / FixedEmbedding."""
    position = jnp.arange(num_rows, dtype=jnp.float32)[:, None]            # (R, 1)
    div_term = jnp.exp(
        jnp.arange(0, d_model, 2, dtype=jnp.float32)
        * (-(math.log(10000.0) / d_model))
    )                                                                       # (D/2,)
    tbl = jnp.zeros((num_rows, d_model), dtype=jnp.float32)
    tbl = tbl.at[:, 0::2].set(jnp.sin(position * div_term))
    tbl = tbl.at[:, 1::2].set(jnp.cos(position * div_term))
    return tbl


def kaiming_conv_weight(key, d_model, c_in, ksize=3):
    """kaiming_normal_(mode='fan_in', nonlinearity='leaky_relu') for Conv1d."""
    fan_in = c_in * ksize
    neg_slope = 0.01  # torch default for leaky_relu in kaiming init
    gain = math.sqrt(2.0 / (1.0 + neg_slope ** 2))
    std = gain / math.sqrt(fan_in)
    return std * jax.random.normal(key, (d_model, c_in, ksize), dtype=jnp.float32)


# ---------------------------------------------------------------------------
# Pallas kernel (specialized per match_mode: which additive terms are active)
# ---------------------------------------------------------------------------
def _make_data_embedding_kernel(c_in, use_pe, use_temporal):
    def kernel(*refs):
        idx = 0
        comb_ref = refs[idx]; idx += 1          # (Bt, L, c_in[+4])   f32
        w_ref = refs[idx]; idx += 1             # (3, c_in, d_model)  f32  (VMEM-resident)
        pe_ref = None
        if use_pe:
            pe_ref = refs[idx]; idx += 1        # (L, d_model)        f32  (VMEM-resident)
        tab_ref = None
        if use_temporal:
            tab_ref = refs[idx]; idx += 1       # (76, d_model)       f32  (VMEM-resident)
        out_ref = refs[idx]                     # (Bt, L, d_model)

        comb = comb_ref[...]
        bt, seq_len = comb.shape[0], comb.shape[1]
        rows = bt * seq_len
        d_model = out_ref.shape[-1]

        x = comb[:, :, :c_in]                   # (Bt, L, c_in)

        # Circular Conv1d(k=3, padding=1, padding_mode='circular') unfold built
        # on-chip: per-batch sublane rotations (XLU; rolling axis=1 never mixes
        # batch rows, and a full-L block makes the wrap exact per sequence).
        x_prev = pltpu.roll(x, 1, axis=1)               # x[t-1]  (circular)
        x_next = pltpu.roll(x, seq_len - 1, axis=1)     # x[t+1]  (circular)

        # Small-K MXU dots, f32 accumulation.  L is kept a sublane multiple so
        # the (Bt, L, K) -> (Bt*L, K) collapse is layout-free.
        acc = jnp.dot(x_prev.reshape(rows, c_in), w_ref[0],
                      preferred_element_type=jnp.float32)
        acc = acc + jnp.dot(x.reshape(rows, c_in), w_ref[1],
                            preferred_element_type=jnp.float32)
        acc = acc + jnp.dot(x_next.reshape(rows, c_in), w_ref[2],
                            preferred_element_type=jnp.float32)

        if use_temporal:
            # Fixed temporal embedding = multi_hot(rows, 76) @ tables(76, d_model).
            # The per-table row offsets were pre-added to the marks in the
            # wrapper, so a mark value directly indexes a row of the
            # concatenated table.  Note on invalid inputs: a moderately
            # out-of-range raw mark (e.g. month=15) aliases into the *next*
            # table's rows (PyTorch nn.Embedding would raise instead); only
            # indices >= 76 produce a zero row.  Valid inputs are identical.
            n_rows = tab_ref.shape[0]
            marks = comb[:, :, c_in:].reshape(rows, 4).astype(jnp.int32)
            col = jax.lax.broadcasted_iota(jnp.int32, (rows, n_rows), 1)
            hot = jnp.zeros((rows, n_rows), jnp.float32)
            for f in range(4):                                   # static unroll
                hot = hot + (col == marks[:, f:f + 1]).astype(jnp.float32)
            acc = acc + jnp.dot(hot, tab_ref[...],
                                preferred_element_type=jnp.float32)

        acc = acc.reshape(bt, seq_len, d_model)
        if use_pe:
            acc = acc + pe_ref[...]             # broadcasts over the batch-tile dim

        out_ref[...] = acc.astype(out_ref.dtype)

    return kernel


# ---------------------------------------------------------------------------
# Gen-aware batch-tile selection
# ---------------------------------------------------------------------------
def _pick_batch_tile(B, L, in_width, d_model):
    """Largest batch tile Bt (a divisor of B) whose double-buffered blocks fit
    the VMEM budget; prefer the smallest Bt that already gives >= ~1 MiB output
    blocks (DMA-efficiency saturates there) and keep >= 2 grid steps when
    possible so v7x's two TensorCores can both work the 'parallel' batch axis."""
    per_b = (L * in_width + L * d_model) * 4        # bytes / batch element / step
    try:
        vmem_cap = int(pltpu.get_tpu_info().vmem_capacity_bytes)
    except Exception:                               # no TPU info at trace time
        vmem_cap = 64 << 20                         # conservative: v7x per-TC VMEM
    budget = min(vmem_cap // 2, 48 << 20)           # headroom for resident w/pe/tables
    divisors = [d for d in range(1, B + 1) if B % d == 0]
    feasible = [d for d in divisors if 2 * d * per_b <= budget] or [1]
    big = [d for d in feasible if d * L * d_model * 4 >= (1 << 20)]
    bt = big[0] if big else feasible[-1]
    if bt == B and B >= 2:                          # keep grid length >= 2 (v7x: 2 TCs)
        smaller = [d for d in feasible if d < B]
        if smaller:
            bt = smaller[-1]
    return bt, vmem_cap


# ---------------------------------------------------------------------------
# Wrapper
# ---------------------------------------------------------------------------
@functools.partial(jax.jit, static_argnames=("match_mode",))
def data_embedding(x, x_mark, conv_w, pe_full, temporal_tables, match_mode="abc"):
    """
    x:       (B, L, c_in)  float32
    x_mark:  (B, L, >=4)   integer time-feature marks [month, day, weekday, hour, ...]
             or None
    conv_w:  (d_model, c_in, 3) Conv1d weight
    pe_full: (max_len, d_model) positional-embedding buffer
    temporal_tables: dict of fixed embedding tables {month, day, weekday, hour}
    """
    B, L, c_in = x.shape
    d_model = conv_w.shape[0]

    # Static specialization of which additive terms exist (no zeros streamed).
    if x_mark is None:
        use_pe, use_temporal = True, False
    elif match_mode == "a":
        use_pe, use_temporal = False, False
    elif match_mode == "ab":
        use_pe, use_temporal = True, False
    elif match_mode == "ac":
        use_pe, use_temporal = False, True
    elif match_mode == "abc":
        use_pe, use_temporal = True, True
    else:
        raise ValueError(f"Unknown ablation mode: {match_mode}")

    # Conv weight stacked by tap: w_stack[k, c, d] = conv_w[d, c, k]
    w_stack = jnp.transpose(conv_w, (2, 1, 0))              # (3, c_in, d_model)

    inputs = []
    in_specs = []

    tables_cat = None
    if use_temporal:
        # Only embed_type='fixed', freq='h' is supported (4 mark columns).
        assert x_mark.shape[-1] >= 4, "need >= 4 time-feature columns (freq='h')"
        order = ("month", "day", "weekday", "hour")          # mark cols 0..3
        sizes = [int(temporal_tables[k].shape[0]) for k in order]
        offsets, running = [], 0
        for s in sizes:
            offsets.append(running)
            running += s
        tables_cat = jnp.concatenate(
            [temporal_tables[k] for k in order], axis=0).astype(jnp.float32)
        # Fold the (offset-shifted) marks into the x stream as extra f32 lanes:
        # one input DMA per step instead of two sub-128-lane micro-DMAs.
        marks = (x_mark[:, :, :4].astype(jnp.int32)
                 + jnp.asarray(offsets, dtype=jnp.int32)).astype(jnp.float32)
        x_comb = jnp.concatenate([x.astype(jnp.float32), marks], axis=-1)
    else:
        x_comb = x.astype(jnp.float32)

    in_width = x_comb.shape[-1]
    bt, vmem_cap = _pick_batch_tile(B, L, in_width, d_model)
    if L % 8 != 0:
        bt = 1   # keep the in-kernel (Bt*L, .) collapse layout-free

    inputs.append(x_comb)
    in_specs.append(pl.BlockSpec((bt, L, in_width), lambda b: (b, 0, 0)))
    inputs.append(w_stack)
    in_specs.append(pl.BlockSpec((3, c_in, d_model), lambda b: (0, 0, 0)))   # resident

    pe_slab = None
    if use_pe:
        pe_slab = pe_full[:L, :].astype(jnp.float32)
        inputs.append(pe_slab)
        in_specs.append(pl.BlockSpec((L, d_model), lambda b: (0, 0)))        # resident
    if use_temporal:
        inputs.append(tables_cat)
        in_specs.append(pl.BlockSpec(tables_cat.shape, lambda b: (0, 0)))    # resident

    kernel = _make_data_embedding_kernel(c_in, use_pe, use_temporal)

    # Purely bandwidth-bound custom call: tell XLA so it can overlap it.
    k_total = 3 * c_in + (int(tables_cat.shape[0]) if use_temporal else 0)
    bytes_accessed = 4 * (x_comb.size + B * L * d_model + w_stack.size
                          + (pe_slab.size if use_pe else 0)
                          + (tables_cat.size if use_temporal else 0))
    cost = pl.CostEstimate(flops=int(2 * B * L * k_total * d_model),
                           transcendentals=0,
                           bytes_accessed=int(bytes_accessed))

    # Gen-aware VMEM limit: double-buffered in/out blocks + resident operands,
    # with headroom, never above ~3/4 of physical VMEM (64 MiB on v7x).
    resident_bytes = 4 * (w_stack.size + (pe_slab.size if use_pe else 0)
                          + (tables_cat.size if use_temporal else 0))
    per_step_bytes = 4 * bt * L * (in_width + d_model)
    vmem_limit = int(min(vmem_cap * 3 // 4,
                         max(32 << 20,
                             2 * per_step_bytes + resident_bytes + (8 << 20))))

    out = pl.pallas_call(
        kernel,
        out_shape=jax.ShapeDtypeStruct((B, L, d_model), jnp.float32),
        grid_spec=pltpu.PrefetchScalarGridSpec(
            num_scalar_prefetch=0,
            grid=(B // bt,),
            in_specs=in_specs,
            out_specs=pl.BlockSpec((bt, L, d_model), lambda b: (b, 0, 0)),
        ),
        compiler_params=pltpu.CompilerParams(
            dimension_semantics=("parallel",),   # batch axis -> megacore-shardable
            vmem_limit_bytes=vmem_limit,
        ),
        cost_estimate=cost,
    )(*inputs)

    # Dropout(p=0.1): identity in eval/inference mode.
    # TODO(synk): training-mode dropout RNG not implemented in-kernel.
    return out


# ---------------------------------------------------------------------------
# Pure-JAX reference for a correctness sanity check
# ---------------------------------------------------------------------------
def reference(x, x_mark, conv_w, pe_full, temporal_tables, match_mode):
    B, L, c_in = x.shape
    x_prev = jnp.roll(x, 1, axis=1)
    x_next = jnp.roll(x, -1, axis=1)
    x3 = jnp.concatenate([x_prev, x, x_next], axis=-1)
    w_mat = jnp.transpose(conv_w, (2, 1, 0)).reshape(3 * c_in, -1)
    value = jnp.einsum("blc,cd->bld", x3, w_mat)
    pe = pe_full[:L, :][None]
    if x_mark is None:
        return value + pe
    xm = x_mark.astype(jnp.int32)
    temporal = (
        jnp.take(temporal_tables["month"], xm[:, :, 0], axis=0)
        + jnp.take(temporal_tables["day"], xm[:, :, 1], axis=0)
        + jnp.take(temporal_tables["weekday"], xm[:, :, 2], axis=0)
        + jnp.take(temporal_tables["hour"], xm[:, :, 3], axis=0)
    )
    if match_mode == "a":
        return value
    if match_mode == "ab":
        return value + pe
    if match_mode == "ac":
        return value + temporal
    if match_mode == "abc":
        return value + pe + temporal
    raise ValueError(match_mode)


if __name__ == "__main__":
    # Small shapes consistent with the module (embed_type='fixed', freq='h').
    # L is a sublane multiple (8) and d_model a lane multiple (128) so the
    # output stores are unmasked/lane-dense.
    B, L, c_in, d_model = 4, 8, 4, 128
    max_len = 64

    key = jax.random.PRNGKey(0)
    k_x, k_w, k_m = jax.random.split(key, 3)

    x = jax.random.normal(k_x, (B, L, c_in), dtype=jnp.float32)

    # x_mark columns: [month(0..12), day(0..31), weekday(0..6), hour(0..23)]
    maxes = jnp.array([13, 32, 7, 24], dtype=jnp.int32)
    x_mark = (
        jax.random.randint(k_m, (B, L, 4), 0, 1_000_000, dtype=jnp.int32) % maxes
    )

    conv_w = kaiming_conv_weight(k_w, d_model, c_in, 3)
    pe_full = sinusoidal_table(max_len, d_model)
    temporal_tables = {
        "month": sinusoidal_table(13, d_model),
        "day": sinusoidal_table(32, d_model),
        "weekday": sinusoidal_table(7, d_model),
        "hour": sinusoidal_table(24, d_model),
    }

    for mode in ("abc", "ab", "ac", "a"):
        out = jax.block_until_ready(
            data_embedding(x, x_mark, conv_w, pe_full, temporal_tables,
                           match_mode=mode))
        ref = reference(x, x_mark, conv_w, pe_full, temporal_tables, mode)
        assert out.shape == (B, L, d_model)
        assert jnp.allclose(out, ref, atol=2e-4, rtol=2e-4), f"mismatch ({mode})"

    # x_mark is None -> value + position embedding (per DataEmbedding.forward).
    out_none = jax.block_until_ready(
        data_embedding(x, None, conv_w, pe_full, temporal_tables,
                       match_mode="abc"))
    ref_none = reference(x, None, conv_w, pe_full, temporal_tables, "abc")
    assert jnp.allclose(out_none, ref_none, atol=2e-4, rtol=2e-4), "mismatch (None)"

    print("KERNEL_OK")
</pallas_src>

<mosaic_0001>
module attributes {stable_mosaic.version = 11 : i64} {
  func.func @kernel(%arg0: i32, %arg1: memref<2x8x8xf32, #tpu.memory_space<vmem>>, %arg2: memref<3x4x128xf32, #tpu.memory_space<vmem>>, %arg3: memref<8x128xf32, #tpu.memory_space<vmem>>, %arg4: memref<76x128xf32, #tpu.memory_space<vmem>>, %arg5: memref<2x8x128xf32, #tpu.memory_space<vmem>>) attributes {dimension_semantics = [#tpu.dimension_semantics<parallel>], iteration_bounds = array<i64: 2>, scalar_prefetch = 0 : i64, scratch_operands = 0 : i64, tpu.core_type = #tpu.core_type<tc>, window_params = [{transform_indices = @transform_0, window_bounds = array<i64: 2, 8, 8>}, {pipeline_mode = #tpu.pipeline_mode<synchronous>, transform_indices = @transform_1, window_bounds = array<i64: 3, 4, 128>}, {pipeline_mode = #tpu.pipeline_mode<synchronous>, transform_indices = @transform_2, window_bounds = array<i64: 8, 128>}, {pipeline_mode = #tpu.pipeline_mode<synchronous>, transform_indices = @transform_3, window_bounds = array<i64: 76, 128>}, {transform_indices = @transform_4, window_bounds = array<i64: 2, 8, 128>}]} {
    %c0 = arith.constant 0 : index
    %c0_0 = arith.constant 0 : index
    %c0_1 = arith.constant 0 : index
    %0 = vector.load %arg1[%c0, %c0_0, %c0_1] : memref<2x8x8xf32, #tpu.memory_space<vmem>>, vector<2x8x8xf32>
    %1 = vector.extract_strided_slice %0 {offsets = [0, 0, 0], sizes = [2, 8, 4], strides = [1, 1, 1]} : vector<2x8x8xf32> to vector<2x8x4xf32>
    %c1_i32 = arith.constant 1 : i32
    %2 = tpu.dynamic_rotate %1 by %c1_i32 dim 1 : vector<2x8x4xf32>, i32 -> vector<2x8x4xf32>
    %c7_i32 = arith.constant 7 : i32
    %3 = tpu.dynamic_rotate %1 by %c7_i32 dim 1 : vector<2x8x4xf32>, i32 -> vector<2x8x4xf32>
    %4 = vector.shape_cast %2 : vector<2x8x4xf32> to vector<16x4xf32>
    %c0_2 = arith.constant 0 : index
    %c0_3 = arith.constant 0 : index
    %c0_4 = arith.constant 0 : index
    %5 = vector.load %arg2[%c0_2, %c0_3, %c0_4] : memref<3x4x128xf32, #tpu.memory_space<vmem>>, vector<1x4x128xf32>
    %6 = vector.shape_cast %5 : vector<1x4x128xf32> to vector<4x128xf32>
    %cst = arith.constant dense<0.000000e+00> : vector<16x128xf32>
    %7 = tpu.matmul %4, %6, %cst {dimension_numbers = #tpu.dot_dimension_numbers<[1], [0], [0], [1], [0, 0, 1, 1], [], []>} : vector<16x4xf32>, vector<4x128xf32>, vector<16x128xf32> -> vector<16x128xf32>
    %8 = vector.shape_cast %1 : vector<2x8x4xf32> to vector<16x4xf32>
    %c1 = arith.constant 1 : index
    %c0_5 = arith.constant 0 : index
    %c0_6 = arith.constant 0 : index
    %9 = vector.load %arg2[%c1, %c0_5, %c0_6] : memref<3x4x128xf32, #tpu.memory_space<vmem>>, vector<1x4x128xf32>
    %10 = vector.shape_cast %9 : vector<1x4x128xf32> to vector<4x128xf32>
    %cst_7 = arith.constant dense<0.000000e+00> : vector<16x128xf32>
    %11 = tpu.matmul %8, %10, %cst_7 {dimension_numbers = #tpu.dot_dimension_numbers<[1], [0], [0], [1], [0, 0, 1, 1], [], []>} : vector<16x4xf32>, vector<4x128xf32>, vector<16x128xf32> -> vector<16x128xf32>
    %12 = arith.addf %7, %11 : vector<16x128xf32>
    %13 = vector.shape_cast %3 : vector<2x8x4xf32> to vector<16x4xf32>
    %c2 = arith.constant 2 : index
    %c0_8 = arith.constant 0 : index
    %c0_9 = arith.constant 0 : index
    %14 = vector.load %arg2[%c2, %c0_8, %c0_9] : memref<3x4x128xf32, #tpu.memory_space<vmem>>, vector<1x4x128xf32>
    %15 = vector.shape_cast %14 : vector<1x4x128xf32> to vector<4x128xf32>
    %cst_10 = arith.constant dense<0.000000e+00> : vector<16x128xf32>
    %16 = tpu.matmul %13, %15, %cst_10 {dimension_numbers = #tpu.dot_dimension_numbers<[1], [0], [0], [1], [0, 0, 1, 1], [], []>} : vector<16x4xf32>, vector<4x128xf32>, vector<16x128xf32> -> vector<16x128xf32>
    %17 = arith.addf %12, %16 : vector<16x128xf32>
    %18 = vector.extract_strided_slice %0 {offsets = [0, 0, 4], sizes = [2, 8, 4], strides = [1, 1, 1]} : vector<2x8x8xf32> to vector<2x8x4xf32>
    %19 = vector.shape_cast %18 : vector<2x8x4xf32> to vector<16x4xf32>
    %20 = arith.fptosi %19 : vector<16x4xf32> to vector<16x4xi32>
    %21 = tpu.iota {dimensions = array<i32: 1>} : vector<16x76xi32>
    %cst_11 = arith.constant 0.000000e+00 : f32
    %22 = vector.broadcast %cst_11 : f32 to vector<16x76xf32>
    %23 = vector.extract_strided_slice %20 {offsets = [0, 0], sizes = [16, 1], strides = [1, 1]} : vector<16x4xi32> to vector<16x1xi32>
    %24 = vector.broadcast %23 : vector<16x1xi32> to vector<16x76xi32>
    %25 = arith.cmpi eq, %21, %24 : vector<16x76xi32>
    %26 = arith.extui %25 : vector<16x76xi1> to vector<16x76xi32>
    %27 = arith.sitofp %26 : vector<16x76xi32> to vector<16x76xf32>
    %28 = arith.addf %22, %27 : vector<16x76xf32>
    %29 = vector.extract_strided_slice %20 {offsets = [0, 1], sizes = [16, 1], strides = [1, 1]} : vector<16x4xi32> to vector<16x1xi32>
    %30 = vector.broadcast %29 : vector<16x1xi32> to vector<16x76xi32>
    %31 = arith.cmpi eq, %21, %30 : vector<16x76xi32>
    %32 = arith.extui %31 : vector<16x76xi1> to vector<16x76xi32>
    %33 = arith.sitofp %32 : vector<16x76xi32> to vector<16x76xf32>
    %34 = arith.addf %28, %33 : vector<16x76xf32>
    %35 = vector.extract_strided_slice %20 {offsets = [0, 2], sizes = [16, 1], strides = [1, 1]} : vector<16x4xi32> to vector<16x1xi32>
    %36 = vector.broadcast %35 : vector<16x1xi32> to vector<16x76xi32>
    %37 = arith.cmpi eq, %21, %36 : vector<16x76xi32>
    %38 = arith.extui %37 : vector<16x76xi1> to vector<16x76xi32>
    %39 = arith.sitofp %38 : vector<16x76xi32> to vector<16x76xf32>
    %40 = arith.addf %34, %39 : vector<16x76xf32>
    %41 = vector.extract_strided_slice %20 {offsets = [0, 3], sizes = [16, 1], strides = [1, 1]} : vector<16x4xi32> to vector<16x1xi32>
    %42 = vector.broadcast %41 : vector<16x1xi32> to vector<16x76xi32>
    %43 = arith.cmpi eq, %21, %42 : vector<16x76xi32>
    %44 = arith.extui %43 : vector<16x76xi1> to vector<16x76xi32>
    %45 = arith.sitofp %44 : vector<16x76xi32> to vector<16x76xf32>
    %46 = arith.addf %40, %45 : vector<16x76xf32>
    %c0_12 = arith.constant 0 : index
    %c0_13 = arith.constant 0 : index
    %47 = vector.load %arg4[%c0_12, %c0_13] : memref<76x128xf32, #tpu.memory_space<vmem>>, vector<76x128xf32>
    %cst_14 = arith.constant dense<0.000000e+00> : vector<16x128xf32>
    %48 = tpu.matmul %46, %47, %cst_14 {dimension_numbers = #tpu.dot_dimension_numbers<[1], [0], [0], [1], [0, 0, 1, 1], [], []>} : vector<16x76xf32>, vector<76x128xf32>, vector<16x128xf32> -> vector<16x128xf32>
    %49 = arith.addf %17, %48 : vector<16x128xf32>
    %50 = vector.shape_cast %49 : vector<16x128xf32> to vector<2x8x128xf32>
    %c0_15 = arith.constant 0 : index
    %c0_16 = arith.constant 0 : index
    %51 = vector.load %arg3[%c0_15, %c0_16] : memref<8x128xf32, #tpu.memory_space<vmem>>, vector<8x128xf32>
    %52 = vector.shape_cast %51 : vector<8x128xf32> to vector<1x8x128xf32>
    %53 = vector.broadcast %52 : vector<1x8x128xf32> to vector<2x8x128xf32>
    %54 = arith.addf %50, %53 : vector<2x8x128xf32>
    %c0_17 = arith.constant 0 : index
    %c0_18 = arith.constant 0 : index
    %c0_19 = arith.constant 0 : index
    %55 = vector.load %arg5[%c0_17, %c0_18, %c0_19] : memref<2x8x128xf32, #tpu.memory_space<vmem>>, vector<2x8x128xf32>
    tpu.vector_store %arg5[%c0_17, %c0_18, %c0_19], %54 {strides = array<i32>} : memref<2x8x128xf32, #tpu.memory_space<vmem>>, vector<2x8x128xf32>,
    return
  }
  func.func @transform_0(%arg0: i32) -> (i32, i32, i32) {
    %c0_i32 = arith.constant 0 : i32
    %c0_i32_0 = arith.constant 0 : i32
    %c0_i32_1 = arith.constant 0 : i32
    return %arg0, %c0_i32, %c0_i32_0 : i32, i32, i32
  }
  func.func @transform_1(%arg0: i32) -> (i32, i32, i32) {
    %c0_i32 = arith.constant 0 : i32
    %c0_i32_0 = arith.constant 0 : i32
    %c0_i32_1 = arith.constant 0 : i32
    %c0_i32_2 = arith.constant 0 : i32
    return %c0_i32, %c0_i32_0, %c0_i32_1 : i32, i32, i32
  }
  func.func @transform_2(%arg0: i32) -> (i32, i32) {
    %c0_i32 = arith.constant 0 : i32
    %c0_i32_0 = arith.constant 0 : i32
    %c0_i32_1 = arith.constant 0 : i32
    return %c0_i32, %c0_i32_0 : i32, i32
  }
  func.func @transform_3(%arg0: i32) -> (i32, i32) {
    %c0_i32 = arith.constant 0 : i32
    %c0_i32_0 = arith.constant 0 : i32
    %c0_i32_1 = arith.constant 0 : i32
    return %c0_i32, %c0_i32_0 : i32, i32
  }
  func.func @transform_4(%arg0: i32) -> (i32, i32, i32) {
    %c0_i32 = arith.constant 0 : i32
    %c0_i32_0 = arith.constant 0 : i32
    %c0_i32_1 = arith.constant 0 : i32
    return %arg0, %c0_i32, %c0_i32_0 : i32, i32, i32
  }
}

</mosaic_0001>

<llo_original>
// kernel: data_embedding.1
$region0: #{data_embedding.1}
  #allocation0 [shape = 'u32[]', space=smem, size = 0x4, offset = 0x4, fixed_abs, tag = 'smem constant byte address 0x4 - core index']
  #allocation1 [shape = 'u32[144,128]{1,0:T(1,128)}', space=vmem, size = 0x12000, scoped, tag = 'internal scratch']
  %s0 = inlined_call_operand.vmem [shape: f32[4,8,8], index: 0, kind: input, shape index: {}]
  %s1 = inlined_call_operand.vmem [shape: f32[3,4,128], index: 1, kind: input, shape index: {}]
  %s2 = inlined_call_operand.vmem [shape: f32[8,128], index: 2, kind: input, shape index: {}]
  %s3 = inlined_call_operand.vmem [shape: f32[76,128], index: 3, kind: input, shape index: {}]
  %s4 = inlined_call_operand.hbm [shape: f32[4,8,128], index: 4, kind: output, shape index: {}]
  %s5 = sld [smem:[#allocation0]]
  $region49: #{data_embedding.1} parent=0
    _
  %s7 = ssub.s32 1, %s5
  %s8 = scalar_select 0, %s7, %s5
  $region1: #{data_embedding.1} parent=0
    #allocation2 [shape = 'u8[16384]{0}', space=vmem, size = 0x4000, scoped, tag = 'output window, operand 0']
    #allocation3 [shape = 's32[2]{0}', space=sflag, size = 0x8, scoped, tag = 'scoped memory for data_embedding.1']
    %9 = vsyncpa [#allocation3], 0
    %s10 = scalar_lea.sflag [#allocation3], 1
    %11 = vsyncpa %s10, 0
    loop: start=0, step=1, limit=4
    $region2: #{data_embedding.1} parent=1 // loop_pre_header
      _
    $region3: #{data_embedding.1} parent=1 // loop_header
      %s13 = sphi 0, %s17
      %p14 = scmp.ge.s32.totalorder %s13, 4
      %s23 = sphi 0, %s25
      %s26 = sphi 0, %s23
      %s27 = sphi 0, %s26
      %s43 = sphi 0, %s27
      %s47 = sphi 0, %s47
      %s49 = sphi 0, %s47
      %s50 = sphi 0, %s49
      %s64 = sphi 0, %s50
      %s68 = sphi 0, %s68
      %s70 = sphi 0, %s68
      %s71 = sphi 0, %s70
      %s85 = sphi 0, %s71
      %s89 = sphi 0, %s89
      %s91 = sphi 0, %s89
      %s92 = sphi 0, %s91
      %s106 = sphi 0, %s92
      %s112 = sphi 0, %s114
      %s115 = sphi 0, %s112
      %s116 = sphi 0, %s115
      %s132 = sphi 0, %s116
    $region4: #{data_embedding.1} parent=1 // loop_header_branch
      %16 = sbr.rel (%p14) target = $region8
    $region5: #{data_embedding.1} parent=1 // loop_body
      %s18 = ssub.s32 %s13, 1
      %s19 = ssub.s32 %s13, 2
      %s20 = sadd.s32 %s13, 1
      %s21 = ssub.s32 %s13, %s20
      %p22 = scmp.eq.s32.totalorder %s21, 0
      %s24 = sadd.s32 %s23, 1
      %s25 = scalar_select %p22, %s23, %s24
      %p28 = pneg %p22
      %p29 = scmp.eq.s32.totalorder %s13, 1
      %p30 = por %p28, %p29
      %p31 = scmp.ne.s32.totalorder %s23, %s26
      %p32 = scmp.eq.s32.totalorder %s13, 0
      %p33 = por %p31, %p32
      %p34 = scmp.ne.s32.totalorder %s23, %s26
      %p35 = scmp.eq.s32.totalorder %s18, 1
      %p36 = por %p34, %p35
      %p37 = scmp.ne.s32.totalorder %s26, %s27
      %p38 = scmp.eq.s32.totalorder %s18, 0
      %p39 = por %p37, %p38
      %p40 = scmp.ne.s32.totalorder %s26, %s27
      %p41 = scmp.eq.s32.totalorder %s19, 1
      %p42 = por %p40, %p41
      %p44 = scmp.ne.s32.totalorder %s27, %s43
      %p45 = scmp.eq.s32.totalorder %s19, 0
      %p46 = por %p44, %p45
      %s48 = sadd.s32 %s47, 1
      %p51 = scmp.eq.s32.totalorder %s13, 1
      %p52 = scmp.ne.s32.totalorder %s47, %s49
      %p53 = scmp.eq.s32.totalorder %s13, 0
      %p54 = por %p52, %p53
      %p55 = scmp.ne.s32.totalorder %s47, %s49
      %p56 = scmp.eq.s32.totalorder %s18, 1
      %p57 = por %p55, %p56
      %p58 = scmp.ne.s32.totalorder %s49, %s50
      %p59 = scmp.eq.s32.totalorder %s18, 0
      %p60 = por %p58, %p59
      %p61 = scmp.ne.s32.totalorder %s49, %s50
      %p62 = scmp.eq.s32.totalorder %s19, 1
      %p63 = por %p61, %p62
      %p65 = scmp.ne.s32.totalorder %s50, %s64
      %p66 = scmp.eq.s32.totalorder %s19, 0
      %p67 = por %p65, %p66
      %s69 = sadd.s32 %s68, 1
      %p72 = scmp.eq.s32.totalorder %s13, 1
      %p73 = scmp.ne.s32.totalorder %s68, %s70
      %p74 = scmp.eq.s32.totalorder %s13, 0
      %p75 = por %p73, %p74
      %p76 = scmp.ne.s32.totalorder %s68, %s70
      %p77 = scmp.eq.s32.totalorder %s18, 1
      %p78 = por %p76, %p77
      %p79 = scmp.ne.s32.totalorder %s70, %s71
      %p80 = scmp.eq.s32.totalorder %s18, 0
      %p81 = por %p79, %p80
      %p82 = scmp.ne.s32.totalorder %s70, %s71
      %p83 = scmp.eq.s32.totalorder %s19, 1
      %p84 = por %p82, %p83
      %p86 = scmp.ne.s32.totalorder %s71, %s85
      %p87 = scmp.eq.s32.totalorder %s19, 0
      %p88 = por %p86, %p87
      %s90 = sadd.s32 %s89, 1
      %p93 = scmp.eq.s32.totalorder %s13, 1
      %p94 = scmp.ne.s32.totalorder %s89, %s91
      %p95 = scmp.eq.s32.totalorder %s13, 0
      %p96 = por %p94, %p95
      %p97 = scmp.ne.s32.totalorder %s89, %s91
      %p98 = scmp.eq.s32.totalorder %s18, 1
      %p99 = por %p97, %p98
      %p100 = scmp.ne.s32.totalorder %s91, %s92
      %p101 = scmp.eq.s32.totalorder %s18, 0
      %p102 = por %p100, %p101
      %p103 = scmp.ne.s32.totalorder %s91, %s92
      %p104 = scmp.eq.s32.totalorder %s19, 1
      %p105 = por %p103, %p104
      %p107 = scmp.ne.s32.totalorder %s92, %s106
      %p108 = scmp.eq.s32.totalorder %s19, 0
      %p109 = por %p107, %p108
      %s110 = ssub.s32 %s13, %s20
      %p111 = scmp.eq.s32.totalorder %s110, 0
      %s113 = sadd.s32 %s112, 1
      %s114 = scalar_select %p111, %s112, %s113
      %p117 = pneg %p111
      %p118 = scmp.eq.s32.totalorder %s13, 1
      %p119 = por %p117, %p118
      %p120 = scmp.ne.s32.totalorder %s112, %s115
      %p121 = scmp.eq.s32.totalorder %s13, 0
      %p122 = por %p120, %p121
      %p123 = scmp.ne.s32.totalorder %s112, %s115
      %p124 = scmp.eq.s32.totalorder %s18, 1
      %p125 = por %p123, %p124
      %p126 = scmp.ne.s32.totalorder %s115, %s116
      %p127 = scmp.eq.s32.totalorder %s18, 0
      %p128 = por %p126, %p127
      %p129 = scmp.ne.s32.totalorder %s115, %s116
      %p130 = scmp.eq.s32.totalorder %s19, 1
      %p131 = por %p129, %p130
      %p133 = scmp.ne.s32.totalorder %s116, %s132
      %p134 = scmp.eq.s32.totalorder %s19, 0
      %p135 = por %p133, %p134
      %p136 = scmp.le.s32.totalorder 1, %s13
      %p137 = scmp.lt.s32.totalorder %s13, 3
      %p138 = pnand %p136, %p137
      %p139 = pneg %p138
      // Predicated region
      $region9: #{data_embedding.1} parent=5 // pred_check
        _
      $region10: #{data_embedding.1} parent=5 // pred_check_branch
        %141 = sbr.rel (%p138) target = $region12
      $region11: #{data_embedding.1} parent=5 // pred_region
        %s142 = ssub.s32 %s13, 1
        // Predicated region
        $region13: #{data_embedding.1} parent=11 // pred_check
          %p143 = pneg %p60
        $region14: #{data_embedding.1} parent=11 // pred_check_branch
          %145 = sbr.rel (%p143) target = $region16
        $region15: #{data_embedding.1} parent=11 // pred_region
          _
        $region16: #{data_embedding.1} parent=11 // pred_fallthru
          _
        // Predicated region
        $region17: #{data_embedding.1} parent=11 // pred_check
          %p146 = pneg %p81
        $region18: #{data_embedding.1} parent=11 // pred_check_branch
          %148 = sbr.rel (%p146) target = $region20
        $region19: #{data_embedding.1} parent=11 // pred_region
          _
        $region20: #{data_embedding.1} parent=11 // pred_fallthru
          _
        // Predicated region
        $region21: #{data_embedding.1} parent=11 // pred_check
          %p149 = pneg %p102
        $region22: #{data_embedding.1} parent=11 // pred_check_branch
          %151 = sbr.rel (%p149) target = $region24
        $region23: #{data_embedding.1} parent=11 // pred_region
          _
        $region24: #{data_embedding.1} parent=11 // pred_fallthru
          _
      $region12: #{data_embedding.1} parent=5 // pred_fallthru
        _
      %p152 = scmp.lt.s32.totalorder %s13, 2
      // Predicated region
      $region25: #{data_embedding.1} parent=5 // pred_check
        %p153 = pneg %p152
      $region26: #{data_embedding.1} parent=5 // pred_check_branch
        %155 = sbr.rel (%p153) target = $region28
      $region27: #{data_embedding.1} parent=5 // pred_region
        // Predicated region
        $region29: #{data_embedding.1} parent=27 // pred_check
          %p156 = pneg %p33
        $region30: #{data_embedding.1} parent=27 // pred_check_branch
          %158 = sbr.rel (%p156) target = $region32
        $region31: #{data_embedding.1} parent=27 // pred_region
          %s159 = smul.u32 2, %s13
          %p160 = scmp.lt.s32.totalorder %s159, 3
          %s161 = scalar_select %p160, %s159, 3
          %s162 = smul.addr %s161, 8
          %s163 = scalar_lea.vmem %s0, %s162
          %s164 = smul.u32 2, %s13
        $region32: #{data_embedding.1} parent=27 // pred_fallthru
          _
      $region28: #{data_embedding.1} parent=5 // pred_fallthru
        _
      %p165 = scmp.le.s32.totalorder 1, %s13
      %p166 = scmp.lt.s32.totalorder %s13, 3
      %p167 = pnand %p165, %p166
      %p168 = pneg %p167
      // Predicated region
      $region33: #{data_embedding.1} parent=5 // pred_check
        _
      $region34: #{data_embedding.1} parent=5 // pred_check_branch
        %170 = sbr.rel (%p167) target = $region36
      $region35: #{data_embedding.1} parent=5 // pred_region
        %s171 = ssub.s32 %s13, 1
        %s172 = smul.u32 2, %s18
        %p173 = scmp.lt.s32.totalorder %s172, 3
        %s174 = scalar_select %p173, %s172, 3
        %s175 = smul.addr %s174, 8
        %s176 = scalar_lea.vmem %s0, %s175
        %p177 = pneg %p39
        %p178 = pneg %p36
        %p179 = pneg %p60
        %p180 = pneg %p57
        %p181 = pneg %p81
        %p182 = pneg %p78
        %p183 = pneg %p102
        %p184 = pneg %p99
        %p185 = pneg %p128
        %p186 = pneg %p125
        %s187 = sand.u32 %s115, 1
        %s188 = scalar_lea.sflag [#allocation3], %s187
        %s189 = sand.u32 %s115, 1
        %s190 = smul.addr %s189, 16
        %s191 = scalar_lea.vmem [#allocation2], %s190
        %s192 = smul.u32 2, %s18
        %p193 = scmp.lt.s32.totalorder %s192, 3
        %s194 = scalar_select %p193, %s192, 3
        %s195 = smul.addr %s194, 8
        %s196 = scalar_lea.vmem %s0, %s195
        %s197 = smul.u32 2, %s18
        %s198 = smul.u32 2, %s18
        %v199 = vld [vmem:[%s196] sm:$0xff]
        %v200 = vld [vmem:[%s196 + $0x8] sm:$0xff]
        %v201 = vrot.slane %v199, 7
        %v202 = vrot.slane %v200, 7
        %v203 = vrot.slane %v199, 1
        %v204 = vrot.slane %v200, 1
        %v205 = vld [vmem:[%s1] sm:$0xf]
        %s206 = scalar_lea.vmem %s1, 4
        %v207 = vld [vmem:[%s206] sm:$0xf]
        %vm208 = vcmask 31744
        %v210 = vsel %vm208, %v199, 0
        %v213 = vsel %vm208, %v200, 0
        %vm215 = vcmask 1043456
        %v217 = vsel %vm215, %v207, 0
        %219 = vmatprep.subr.mxu0 0.0
        %220 = vmatpush1.msra.mxu0 %v217
        %221 = vmatprep.subr.mxu0 0.0
        %222 = vmatpush1.msra.mxu0 0.0
        %223 = vmatprep.subr.mxu0 0.0
        %224 = vmatpush1.msra.mxu0 0.0
        %225 = vmatprep.subr.mxu0 0.0
        %226 = vmatpush1.msra.mxu0 0.0
        %227 = vmatprep.subr.mxu0 0.0
        %228 = vmatpush1.msra.mxu0 0.0
        %229 = vmatprep.subr.mxu0 0.0
        %230 = vmatpush1.msra.mxu0 0.0
        %231 = vmatprep.subr.mxu0 0.0
        %232 = vmatpush1.msra.mxu0 0.0
        %233 = vmatprep.subr.mxu0 0.0
        %234 = vmatpush1.msra.mxu0 0.0
        %235 = vmatprep.subr.mxu0 0.0
        %236 = vmatpush1.msra.mxu0 0.0
        %237 = vmatprep.subr.mxu0 0.0
        %238 = vmatpush1.msra.mxu0 0.0
        %239 = vmatprep.subr.mxu0 0.0
        %240 = vmatpush1.msra.mxu0 0.0
        %241 = vmatprep.subr.mxu0 0.0
        %242 = vmatpush1.msra.mxu0 0.0
        %243 = vmatprep.subr.mxu0 0.0
        %244 = vmatpush1.msra.mxu0 0.0
        %245 = vmatprep.subr.mxu0 0.0
        %246 = vmatpush1.msra.mxu0 0.0
        %247 = vmatprep.subr.mxu0 0.0
        %248 = vmatpush1.msra.mxu0 0.0
        %249 = vmatprep.subr.mxu0 0.0
        %250 = vmatpush1.msra.mxu0 0.0
        %251 = vmatprep.subr.mxu0 0.0
        %252 = vmatpush1.msra.mxu0 0.0
        %253 = vmatprep.subr.mxu0 0.0
        %254 = vmatpush1.msra.mxu0 0.0
        %255 = vmatprep.subr.mxu0 0.0
        %256 = vmatpush1.msra.mxu0 0.0
        %257 = vmatprep.subr.mxu0 0.0
        %258 = vmatpush1.msra.mxu0 0.0
        %259 = vmatprep.subr.mxu0 0.0
        %260 = vmatpush1.msra.mxu0 0.0
        %261 = vmatprep.subr.mxu0 0.0
        %262 = vmatpush1.msra.mxu0 0.0
        %263 = vmatprep.subr.mxu0 0.0
        %264 = vmatpush1.msra.mxu0 0.0
        %265 = vmatprep.subr.mxu0 0.0
        %266 = vmatpush1.msra.mxu0 0.0
        %267 = vmatprep.subr.mxu0 0.0
        %268 = vmatpush1.msra.mxu0 0.0
        %269 = vmatprep.subr.mxu0 0.0
        %270 = vmatpush1.msra.mxu0 0.0
        %271 = vmatprep.subr.mxu0 0.0
        %272 = vmatpush1.msra.mxu0 0.0
        %273 = vmatprep.subr.mxu0 0.0
        %274 = vmatpush1.msra.mxu0 0.0
        %275 = vmatprep.subr.mxu0 0.0
        %276 = vmatpush1.msra.mxu0 0.0
        %277 = vmatprep.subr.mxu0 0.0
        %278 = vmatpush1.msra.mxu0 0.0
        %279 = vmatprep.subr.mxu0 0.0
        %280 = vmatpush1.msra.mxu0 0.0
        %281 = vmatprep.subr.mxu0 0.0
        %282 = vmatpush1.msra.mxu0 0.0
        %283 = vmatprep.mubr.f32.mxu0 0.0
        %284 = vmatmul.mubr.f32.gmra.mrb[0].mxu0 %v210
        %v285 = vpop.f32.mrb[0].mxu0
        %v286 = vadd.f32 0.0, %v285
        %v287 = vpop.f32.mrb[0].mxu0
        %288 = vmatprep.mubr.f32.mxu0 0.0
        %289 = vmatmul.mubr.f32.gmra.mrb[0].mxu0 %v213
        %v290 = vpop.f32.mrb[0].mxu0
        %v291 = vadd.f32 0.0, %v290
        %v292 = vpop.f32.mrb[0].mxu0
        %293 = vdwg.mxu0
        %v295 = vsel %vm208, %v201, 0
        %v298 = vsel %vm208, %v202, 0
        %v301 = vsel %vm215, %v205, 0
        %303 = vmatprep.subr.mxu0 0.0
        %304 = vmatpush1.msra.mxu0 %v301
        %305 = vmatprep.subr.mxu0 0.0
        %306 = vmatpush1.msra.mxu0 0.0
        %307 = vmatprep.subr.mxu0 0.0
        %308 = vmatpush1.msra.mxu0 0.0
        %309 = vmatprep.subr.mxu0 0.0
        %310 = vmatpush1.msra.mxu0 0.0
        %311 = vmatprep.subr.mxu0 0.0
        %312 = vmatpush1.msra.mxu0 0.0
        %313 = vmatprep.subr.mxu0 0.0
        %314 = vmatpush1.msra.mxu0 0.0
        %315 = vmatprep.subr.mxu0 0.0
        %316 = vmatpush1.msra.mxu0 0.0
        %317 = vmatprep.subr.mxu0 0.0
        %318 = vmatpush1.msra.mxu0 0.0
        %319 = vmatprep.subr.mxu0 0.0
        %320 = vmatpush1.msra.mxu0 0.0
        %321 = vmatprep.subr.mxu0 0.0
        %322 = vmatpush1.msra.mxu0 0.0
        %323 = vmatprep.subr.mxu0 0.0
        %324 = vmatpush1.msra.mxu0 0.0
        %325 = vmatprep.subr.mxu0 0.0
        %326 = vmatpush1.msra.mxu0 0.0
        %327 = vmatprep.subr.mxu0 0.0
        %328 = vmatpush1.msra.mxu0 0.0
        %329 = vmatprep.subr.mxu0 0.0
        %330 = vmatpush1.msra.mxu0 0.0
        %331 = vmatprep.subr.mxu0 0.0
        %332 = vmatpush1.msra.mxu0 0.0
        %333 = vmatprep.subr.mxu0 0.0
        %334 = vmatpush1.msra.mxu0 0.0
        %335 = vmatprep.subr.mxu0 0.0
        %336 = vmatpush1.msra.mxu0 0.0
        %337 = vmatprep.subr.mxu0 0.0
        %338 = vmatpush1.msra.mxu0 0.0
        %339 = vmatprep.subr.mxu0 0.0
        %340 = vmatpush1.msra.mxu0 0.0
        %341 = vmatprep.subr.mxu0 0.0
        %342 = vmatpush1.msra.mxu0 0.0
        %343 = vmatprep.subr.mxu0 0.0
        %344 = vmatpush1.msra.mxu0 0.0
        %345 = vmatprep.subr.mxu0 0.0
        %346 = vmatpush1.msra.mxu0 0.0
        %347 = vmatprep.subr.mxu0 0.0
        %348 = vmatpush1.msra.mxu0 0.0
        %349 = vmatprep.subr.mxu0 0.0
        %350 = vmatpush1.msra.mxu0 0.0
        %351 = vmatprep.subr.mxu0 0.0
        %352 = vmatpush1.msra.mxu0 0.0
        %353 = vmatprep.subr.mxu0 0.0
        %354 = vmatpush1.msra.mxu0 0.0
        %355 = vmatprep.subr.mxu0 0.0
        %356 = vmatpush1.msra.mxu0 0.0
        %357 = vmatprep.subr.mxu0 0.0
        %358 = vmatpush1.msra.mxu0 0.0
        %359 = vmatprep.subr.mxu0 0.0
        %360 = vmatpush1.msra.mxu0 0.0
        %361 = vmatprep.subr.mxu0 0.0
        %362 = vmatpush1.msra.mxu0 0.0
        %363 = vmatprep.subr.mxu0 0.0
        %364 = vmatpush1.msra.mxu0 0.0
        %365 = vmatprep.subr.mxu0 0.0
        %366 = vmatpush1.msra.mxu0 0.0
        %367 = vmatprep.mubr.f32.mxu0 0.0
        %368 = vmatmul.mubr.f32.gmra.mrb[0].mxu0 %v295
        %v369 = vpop.f32.mrb[0].mxu0
        %v370 = vadd.f32 %v286, %v369
        %v371 = vpop.f32.mrb[0].mxu0
        %372 = vmatprep.mubr.f32.mxu0 0.0
        %373 = vmatmul.mubr.f32.gmra.mrb[0].mxu0 %v298
        %v374 = vpop.f32.mrb[0].mxu0
        %v375 = vadd.f32 %v291, %v374
        %v376 = vpop.f32.mrb[0].mxu0
        %377 = vdwg.mxu0
        %s378 = scalar_lea.vmem %s1, 8
        %v379 = vld [vmem:[%s378] sm:$0xf]
        %v381 = vsel %vm208, %v203, 0
        %v384 = vsel %vm208, %v204, 0
        %v387 = vsel %vm215, %v379, 0
        %389 = vmatprep.subr.mxu0 0.0
        %390 = vmatpush1.msra.mxu0 %v387
        %391 = vmatprep.subr.mxu0 0.0
        %392 = vmatpush1.msra.mxu0 0.0
        %393 = vmatprep.subr.mxu0 0.0
        %394 = vmatpush1.msra.mxu0 0.0
        %395 = vmatprep.subr.mxu0 0.0
        %396 = vmatpush1.msra.mxu0 0.0
        %397 = vmatprep.subr.mxu0 0.0
        %398 = vmatpush1.msra.mxu0 0.0
        %399 = vmatprep.subr.mxu0 0.0
        %400 = vmatpush1.msra.mxu0 0.0
        %401 = vmatprep.subr.mxu0 0.0
        %402 = vmatpush1.msra.mxu0 0.0
        %403 = vmatprep.subr.mxu0 0.0
        %404 = vmatpush1.msra.mxu0 0.0
        %405 = vmatprep.subr.mxu0 0.0
        %406 = vmatpush1.msra.mxu0 0.0
        %407 = vmatprep.subr.mxu0 0.0
        %408 = vmatpush1.msra.mxu0 0.0
        %409 = vmatprep.subr.mxu0 0.0
        %410 = vmatpush1.msra.mxu0 0.0
        %411 = vmatprep.subr.mxu0 0.0
        %412 = vmatpush1.msra.mxu0 0.0
        %413 = vmatprep.subr.mxu0 0.0
        %414 = vmatpush1.msra.mxu0 0.0
        %415 = vmatprep.subr.mxu0 0.0
        %416 = vmatpush1.msra.mxu0 0.0
        %417 = vmatprep.subr.mxu0 0.0
        %418 = vmatpush1.msra.mxu0 0.0
        %419 = vmatprep.subr.mxu0 0.0
        %420 = vmatpush1.msra.mxu0 0.0
        %421 = vmatprep.subr.mxu0 0.0
        %422 = vmatpush1.msra.mxu0 0.0
        %423 = vmatprep.subr.mxu0 0.0
        %424 = vmatpush1.msra.mxu0 0.0
        %425 = vmatprep.subr.mxu0 0.0
        %426 = vmatpush1.msra.mxu0 0.0
        %427 = vmatprep.subr.mxu0 0.0
        %428 = vmatpush1.msra.mxu0 0.0
        %429 = vmatprep.subr.mxu0 0.0
        %430 = vmatpush1.msra.mxu0 0.0
        %431 = vmatprep.subr.mxu0 0.0
        %432 = vmatpush1.msra.mxu0 0.0
        %433 = vmatprep.subr.mxu0 0.0
        %434 = vmatpush1.msra.mxu0 0.0
        %435 = vmatprep.subr.mxu0 0.0
        %436 = vmatpush1.msra.mxu0 0.0
        %437 = vmatprep.subr.mxu0 0.0
        %438 = vmatpush1.msra.mxu0 0.0
        %439 = vmatprep.subr.mxu0 0.0
        %440 = vmatpush1.msra.mxu0 0.0
        %441 = vmatprep.subr.mxu0 0.0
        %442 = vmatpush1.msra.mxu0 0.0
        %443 = vmatprep.subr.mxu0 0.0
        %444 = vmatpush1.msra.mxu0 0.0
        %445 = vmatprep.subr.mxu0 0.0
        %446 = vmatpush1.msra.mxu0 0.0
        %447 = vmatprep.subr.mxu0 0.0
        %448 = vmatpush1.msra.mxu0 0.0
        %449 = vmatprep.subr.mxu0 0.0
        %450 = vmatpush1.msra.mxu0 0.0
        %451 = vmatprep.subr.mxu0 0.0
        %452 = vmatpush1.msra.mxu0 0.0
        %453 = vmatprep.mubr.f32.mxu0 0.0
        %454 = vmatmul.mubr.f32.gmra.mrb[0].mxu0 %v381
        %v455 = vpop.f32.mrb[0].mxu0
        %v456 = vadd.f32 0.0, %v455
        %v457 = vpop.f32.mrb[0].mxu0
        %458 = vmatprep.mubr.f32.mxu0 0.0
        %459 = vmatmul.mubr.f32.gmra.mrb[0].mxu0 %v384
        %v460 = vpop.f32.mrb[0].mxu0
        %v461 = vadd.f32 0.0, %v460
        %v462 = vpop.f32.mrb[0].mxu0
        %463 = vdwg.mxu0
        %v464 = vadd.f32 %v370, %v456
        %v465 = vadd.f32 %v375, %v461
        %v466 = vcvt.f32.s32.to.zero.pseudo %v199
        %v467 = vcvt.f32.s32.to.zero.pseudo %v200
        %v468 = vlaneseq
        %v469 = vand.u32 %v468, 127
        %470 = vset.pattern.permute.xlu0 4
        %471 = vperm.xlu0 %470, %v466
        %v472 = vpop.permute.xlu0 %471
        %473 = vset.pattern.permute.xlu0 4
        %474 = vperm.xlu0 %473, %v467
        %v475 = vpop.permute.xlu0 %474
        %vm476 = vcmp.eq.s32.totalorder %v469, %v472
        %vm477 = vcmp.eq.s32.totalorder %v469, %v475
        %v478 = vsel %vm476, 1, 0
        %v479 = vsel %vm477, 1, 0
        %v480 = vcvt.s32.f32 %v478
        %v481 = vcvt.s32.f32 %v479
        %v482 = vadd.f32 %v480, 0.0
        %v483 = vadd.f32 %v481, 0.0
        %484 = vset.pattern.permute.xlu0 5
        %485 = vperm.xlu0 %484, %v466
        %v486 = vpop.permute.xlu0 %485
        %487 = vset.pattern.permute.xlu0 5
        %488 = vperm.xlu0 %487, %v467
        %v489 = vpop.permute.xlu0 %488
        %vm490 = vcmp.eq.s32.totalorder %v469, %v486
        %vm491 = vcmp.eq.s32.totalorder %v469, %v489
        %v492 = vsel %vm490, 1, 0
        %v493 = vsel %vm491, 1, 0
        %v494 = vcvt.s32.f32 %v492
        %v495 = vcvt.s32.f32 %v493
        %v496 = vadd.f32 %v482, %v494
        %v497 = vadd.f32 %v483, %v495
        %498 = vset.pattern.permute.xlu0 6
        %499 = vperm.xlu0 %498, %v466
        %v500 = vpop.permute.xlu0 %499
        %501 = vset.pattern.permute.xlu0 6
        %502 = vperm.xlu0 %501, %v467
        %v503 = vpop.permute.xlu0 %502
        %vm504 = vcmp.eq.s32.totalorder %v469, %v500
        %vm505 = vcmp.eq.s32.totalorder %v469, %v503
        %v506 = vsel %vm504, 1, 0
        %v507 = vsel %vm505, 1, 0
        %v508 = vcvt.s32.f32 %v506
        %v509 = vcvt.s32.f32 %v507
        %v510 = vadd.f32 %v496, %v508
        %v511 = vadd.f32 %v497, %v509
        %512 = vset.pattern.permute.xlu0 7
        %513 = vperm.xlu0 %512, %v466
        %v514 = vpop.permute.xlu0 %513
        %515 = vset.pattern.permute.xlu0 7
        %516 = vperm.xlu0 %515, %v467
        %v517 = vpop.permute.xlu0 %516
        %vm518 = vcmp.eq.s32.totalorder %v469, %v514
        %vm519 = vcmp.eq.s32.totalorder %v469, %v517
        %v520 = vsel %vm518, 1, 0
        %v521 = vsel %vm519, 1, 0
        %v522 = vcvt.s32.f32 %v520
        %v523 = vcvt.s32.f32 %v521
        %v524 = vadd.f32 %v510, %v522
        %v525 = vadd.f32 %v511, %v523
        %v526 = vld [vmem:[%s3] sm:$0xff]
        %v527 = vld [vmem:[%s3 + $0x8] sm:$0xff]
        %v528 = vld [vmem:[%s3 + $0x10] sm:$0xff]
        %v529 = vld [vmem:[%s3 + $0x18] sm:$0xff]
        %v530 = vld [vmem:[%s3 + $0x20] sm:$0xff]
        %v531 = vld [vmem:[%s3 + $0x28] sm:$0xff]
        %v532 = vld [vmem:[%s3 + $0x30] sm:$0xff]
        %v533 = vld [vmem:[%s3 + $0x38] sm:$0xff]
        %v534 = vld [vmem:[%s3 + $0x40] sm:$0xff]
        %v535 = vld [vmem:[%s3 + $0x48] sm:$0xf]
        %vm536 = vcmask 621568
        %v538 = vsel %vm536, %v524, 0
        %v541 = vsel %vm536, %v525, 0
        %v544 = vsel %vm215, %v535, 0
        %546 = vmatprep.subr.mxu0 0.0
        %547 = vmatpush1.msra.mxu0 %v526
        %548 = vmatprep.subr.mxu0 0.0
        %549 = vmatpush1.msra.mxu0 %v527
        %550 = vmatprep.subr.mxu0 0.0
        %551 = vmatpush1.msra.mxu0 %v528
        %552 = vmatprep.subr.mxu0 0.0
        %553 = vmatpush1.msra.mxu0 %v529
        %554 = vmatprep.subr.mxu0 0.0
        %555 = vmatpush1.msra.mxu0 %v530
        %556 = vmatprep.subr.mxu0 0.0
        %557 = vmatpush1.msra.mxu0 %v531
        %558 = vmatprep.subr.mxu0 0.0
        %559 = vmatpush1.msra.mxu0 %v532
        %560 = vmatprep.subr.mxu0 0.0
        %561 = vmatpush1.msra.mxu0 %v533
        %562 = vmatprep.subr.mxu0 0.0
        %563 = vmatpush1.msra.mxu0 %v534
        %564 = vmatprep.subr.mxu0 0.0
        %565 = vmatpush1.msra.mxu0 %v544
        %566 = vmatprep.subr.mxu0 0.0
        %567 = vmatpush1.msra.mxu0 0.0
        %568 = vmatprep.subr.mxu0 0.0
        %569 = vmatpush1.msra.mxu0 0.0
        %570 = vmatprep.subr.mxu0 0.0
        %571 = vmatpush1.msra.mxu0 0.0
        %572 = vmatprep.subr.mxu0 0.0
        %573 = vmatpush1.msra.mxu0 0.0
        %574 = vmatprep.subr.mxu0 0.0
        %575 = vmatpush1.msra.mxu0 0.0
        %576 = vmatprep.subr.mxu0 0.0
        %577 = vmatpush1.msra.mxu0 0.0
        %578 = vmatprep.subr.mxu0 0.0
        %579 = vmatpush1.msra.mxu0 0.0
        %580 = vmatprep.subr.mxu0 0.0
        %581 = vmatpush1.msra.mxu0 0.0
        %582 = vmatprep.subr.mxu0 0.0
        %583 = vmatpush1.msra.mxu0 0.0
        %584 = vmatprep.subr.mxu0 0.0
        %585 = vmatpush1.msra.mxu0 0.0
        %586 = vmatprep.subr.mxu0 0.0
        %587 = vmatpush1.msra.mxu0 0.0
        %588 = vmatprep.subr.mxu0 0.0
        %589 = vmatpush1.msra.mxu0 0.0
        %590 = vmatprep.subr.mxu0 0.0
        %591 = vmatpush1.msra.mxu0 0.0
        %592 = vmatprep.subr.mxu0 0.0
        %593 = vmatpush1.msra.mxu0 0.0
        %594 = vmatprep.subr.mxu0 0.0
        %595 = vmatpush1.msra.mxu0 0.0
        %596 = vmatprep.subr.mxu0 0.0
        %597 = vmatpush1.msra.mxu0 0.0
        %598 = vmatprep.subr.mxu0 0.0
        %599 = vmatpush1.msra.mxu0 0.0
        %600 = vmatprep.subr.mxu0 0.0
        %601 = vmatpush1.msra.mxu0 0.0
        %602 = vmatprep.subr.mxu0 0.0
        %603 = vmatpush1.msra.mxu0 0.0
        %604 = vmatprep.subr.mxu0 0.0
        %605 = vmatpush1.msra.mxu0 0.0
        %606 = vmatprep.subr.mxu0 0.0
        %607 = vmatpush1.msra.mxu0 0.0
        %608 = vmatprep.subr.mxu0 0.0
        %609 = vmatpush1.msra.mxu0 0.0
        %610 = vmatprep.mubr.f32.mxu0 0.0
        %611 = vmatmul.mubr.f32.gmra.mrb[0].mxu0 %v538
        %v612 = vpop.f32.mrb[0].mxu0
        %v613 = vadd.f32 0.0, %v612
        %v614 = vpop.f32.mrb[0].mxu0
        %615 = vmatprep.mubr.f32.mxu0 0.0
        %616 = vmatmul.mubr.f32.gmra.mrb[0].mxu0 %v541
        %v617 = vpop.f32.mrb[0].mxu0
        %v618 = vadd.f32 0.0, %v617
        %v619 = vpop.f32.mrb[0].mxu0
        %620 = vdwg.mxu0
        %v621 = vadd.f32 %v464, %v613
        %v622 = vadd.f32 %v465, %v618
        %v623 = vld [vmem:[%s2] sm:$0xff]
        %v624 = vadd.f32 %v621, %v623
        %v625 = vadd.f32 %v622, %v623
        %626 = vst [vmem:[%s191] sm:$0xff] %v624
        %627 = vst [vmem:[%s191 + $0x8] sm:$0xff] %v625
        %s628 = sand.u32 %s115, 1
        %s629 = scalar_lea.sflag [#allocation3], %s628
        %s630 = sand.u32 %s115, 1
        %s631 = smul.addr %s630, 16
        %s632 = scalar_lea.vmem [#allocation2], %s631
        // Predicated region
        $region37: #{data_embedding.1} parent=35 // pred_check
          %p633 = pneg %p125
        $region38: #{data_embedding.1} parent=35 // pred_check_branch
          %635 = sbr.rel (%p633) target = $region40
        $region39: #{data_embedding.1} parent=35 // pred_region
          %s636 = smul.u32 2, %s18
          %s638 = ssub.s32 256, 256
          %639 = vsyncadd %s629, %s638
          %s640 = smul.addr %s636, 128
          %s641 = scalar_lea.hbm %s4, %s640
          %s642 = sshll.u32 %s632, 4
          %s643 = int_to_ptr.vmem [resolvable:$true] %s642
          %648 = dma.vmem_to_hbm [thread:$0]  %s643, 256, %s641, %s629, 128, 128, 8
        $region40: #{data_embedding.1} parent=35 // pred_fallthru
          _
      $region36: #{data_embedding.1} parent=5 // pred_fallthru
        _
      %p649 = scmp.le.s32.totalorder 2, %s13
      // Predicated region
      $region41: #{data_embedding.1} parent=5 // pred_check
        %p650 = pneg %p649
      $region42: #{data_embedding.1} parent=5 // pred_check_branch
        %652 = sbr.rel (%p650) target = $region44
      $region43: #{data_embedding.1} parent=5 // pred_region
        %s653 = ssub.s32 %s13, 2
        // Predicated region
        $region45: #{data_embedding.1} parent=43 // pred_check
          %p654 = pneg %p131
        $region46: #{data_embedding.1} parent=43 // pred_check_branch
          %656 = sbr.rel (%p654) target = $region48
        $region47: #{data_embedding.1} parent=43 // pred_region
          %s657 = sand.u32 %s116, 1
          %s658 = scalar_lea.sflag [#allocation3], %s657
          %s659 = sand.u32 %s116, 1
          %s660 = smul.addr %s659, 16
          %s661 = scalar_lea.vmem [#allocation2], %s660
          %662 = dma.done %s658, 256
        $region48: #{data_embedding.1} parent=43 // pred_fallthru
          _
      $region44: #{data_embedding.1} parent=5 // pred_fallthru
        _
    $region6: #{data_embedding.1} parent=1 // loop_footer
      %s17 = sadd.s32 1, %s13
    $region7: #{data_embedding.1} parent=1 // loop_footer_branch
      %12 = sbr.rel target = $region3
    $region8: #{data_embedding.1} parent=1 // loop_exit
      _
    %663 = vsyncpa [#allocation3], 1
    %s664 = scalar_lea.sflag [#allocation3], 1
    %665 = vsyncpa %s664, 1

</llo_original>
